<compile_context>
chip_gen: v5e
topology: v5e:2x2
jax: 0.10.0
libtpu: 0.0.40
codegen_flags: <defaults>
</compile_context>

<pallas_src>
import jax
import jax.numpy as jnp
from jax import lax
from jax.experimental import pallas as pl
from jax.experimental.pallas import tpu as pltpu

# ----------------------------- problem sizes ------------------------------
S = 8            # sequence length
N = 2            # batch
E = 32           # d_model
NHEAD = 4
HD = E // NHEAD
F = 64           # dim_feedforward
SN = S * N       # flattened (seq * batch) rows, row index = s*N + n
LN_EPS = 1e-5

# ---- bf16 weight slab row layout (shared by wrapper & kernel) ----
W_QKV = 0            # rows [0, 2E)   cols [0, 3E) : stacked in-proj
W_O = 2 * E          # rows [2E, 3E)  cols [0, E)  : out-proj
W_1 = 3 * E          # rows [3E, 4E)  cols [0, F)  : linear1
W_2 = 4 * E          # rows [4E, 4E+F) cols [0, E) : linear2
W_ROWS = 4 * E + F   # 192

# ---- f32 bias / LayerNorm slab row layout ----
R_BQKV, R_BO, R_B1, R_B2, R_G1, R_BE1, R_G2, R_BE2 = range(8)
SLAB_ROWS = 8
WB = 3 * E           # 96 lanes (>= F)


# ------------------------------ Pallas kernel ------------------------------
def encoder_layer_kernel(xp_ref, w_ref, b_ref, out_ref):
    xp = xp_ref[...]                       # (SN, 2E) f32, lanes = [x | pos]
    x = xp[:, :E]                          # f32 residual input (= src)

    # biases / LayerNorm params (f32, static row slices, lane offset 0)
    bqkv = b_ref[R_BQKV:R_BQKV + 1, :3 * E]   # (1, 3E) = [bq*scale | bk | bv]
    bo = b_ref[R_BO:R_BO + 1, :E]
    b1 = b_ref[R_B1:R_B1 + 1, :F]
    b2 = b_ref[R_B2:R_B2 + 1, :E]
    g1 = b_ref[R_G1:R_G1 + 1, :E]
    be1 = b_ref[R_BE1:R_BE1 + 1, :E]
    g2 = b_ref[R_G2:R_G2 + 1, :E]
    be2 = b_ref[R_BE2:R_BE2 + 1, :E]

    # fused q|k|v in-projection: ONE (SN,2E)@(2E,3E) bf16 matmul, f32 accumulate
    wqkv = w_ref[W_QKV:W_QKV + 2 * E, :]                      # (2E, 3E) bf16
    qkv = jnp.dot(xp.astype(jnp.bfloat16), wqkv,
                  preferred_element_type=jnp.float32) + bqkv  # (SN, 3E) f32
    qb = qkv[:, :E].astype(jnp.bfloat16)          # 1/sqrt(HD) folded into Wq/bq
    kb = qkv[:, E:2 * E].astype(jnp.bfloat16)
    vb = qkv[:, 2 * E:3 * E].astype(jnp.bfloat16)

    # static additive cross-batch mask (rows interleaved s*N + n), built ONCE.
    # Safe: every query row always has same-batch keys (diagonal never masked).
    ri = lax.broadcasted_iota(jnp.int32, (SN, SN), 0)
    ci = lax.broadcasted_iota(jnp.int32, (SN, SN), 1)
    mask_add = jnp.where((ri % N) == (ci % N), 0.0, -1e30).astype(jnp.float32)

    # per-head attention; heads collected for a single lane-concat + out-proj
    ctx = []
    for h in range(NHEAD):                         # static 4-iteration loop
        qh = qb[:, h * HD:(h + 1) * HD]            # (SN, HD) bf16
        kh = kb[:, h * HD:(h + 1) * HD]
        vh = vb[:, h * HD:(h + 1) * HD]
        s = lax.dot_general(qh, kh, (((1,), (1,)), ((), ())),
                            preferred_element_type=jnp.float32) + mask_add
        s = s - jnp.max(s, axis=-1, keepdims=True)
        p = jnp.exp(s)
        p = p / jnp.sum(p, axis=-1, keepdims=True)          # exact denominator
        ctx.append(jnp.dot(p.astype(jnp.bfloat16), vh,
                           preferred_element_type=jnp.float32))   # (SN, HD) f32

    ctx_cat = jnp.concatenate(ctx, axis=-1)                  # (SN, E) f32
    wo = w_ref[W_O:W_O + E, :E]                              # (E, E) bf16
    attn = jnp.dot(ctx_cat.astype(jnp.bfloat16), wo,
                   preferred_element_type=jnp.float32) + bo  # (SN, E) f32

    # residual + LayerNorm1 (dropout1 identity in eval mode)
    src = x + attn
    mu = jnp.mean(src, axis=-1, keepdims=True)
    var = jnp.mean((src - mu) ** 2, axis=-1, keepdims=True)
    src = (src - mu) * lax.rsqrt(var + LN_EPS) * g1 + be1

    # feed-forward: linear2(dropout(relu(linear1(src)))), dropout identity
    w1 = w_ref[W_1:W_1 + E, :F]                              # (E, F) bf16
    w2 = w_ref[W_2:W_2 + F, :E]                              # (F, E) bf16
    h1 = jnp.dot(src.astype(jnp.bfloat16), w1,
                 preferred_element_type=jnp.float32) + b1
    h1 = jnp.maximum(h1, 0.0)
    ffn = jnp.dot(h1.astype(jnp.bfloat16), w2,
                  preferred_element_type=jnp.float32) + b2

    # residual + LayerNorm2 (dropout2 identity in eval mode)
    src = src + ffn
    mu = jnp.mean(src, axis=-1, keepdims=True)
    var = jnp.mean((src - mu) ** 2, axis=-1, keepdims=True)
    src = (src - mu) * lax.rsqrt(var + LN_EPS) * g2 + be2

    out_ref[...] = src.astype(out_ref.dtype)


# ------------------------------ wrapper ------------------------------------
def pack_params(p):
    """Pack raw (pre-transposed to (in, out)) params into two slabs."""
    scale = 1.0 / (HD ** 0.5)
    wq_s = p["wq"] * scale                     # fold softmax scale into Wq / bq
    bq_s = p["bq"][0] * scale

    # stacked in-proj weights: [x|pos] rows -> [[Wq,Wk,Wv],[Wq,Wk,0]]  (2E, 3E)
    top = jnp.concatenate([wq_s, p["wk"], p["wv"]], axis=1)
    bot = jnp.concatenate([wq_s, p["wk"], jnp.zeros((E, E), jnp.float32)], axis=1)
    wqkv = jnp.concatenate([top, bot], axis=0)

    wslab = jnp.zeros((W_ROWS, 3 * E), jnp.float32)
    wslab = wslab.at[W_QKV:W_QKV + 2 * E, :].set(wqkv)
    wslab = wslab.at[W_O:W_O + E, :E].set(p["wo"])
    wslab = wslab.at[W_1:W_1 + E, :F].set(p["w1"])
    wslab = wslab.at[W_2:W_2 + F, :E].set(p["w2"])
    wslab = wslab.astype(jnp.bfloat16)         # pre-cast: MXU operands are bf16

    bslab = jnp.zeros((SLAB_ROWS, WB), jnp.float32)
    bslab = bslab.at[R_BQKV, :3 * E].set(
        jnp.concatenate([bq_s, p["bk"][0], p["bv"][0]]))
    bslab = bslab.at[R_BO, :E].set(p["bo"][0])
    bslab = bslab.at[R_B1, :F].set(p["b1"][0])
    bslab = bslab.at[R_B2, :E].set(p["b2"][0])
    bslab = bslab.at[R_G1, :E].set(p["g1"][0])
    bslab = bslab.at[R_BE1, :E].set(p["be1"][0])
    bslab = bslab.at[R_G2, :E].set(p["g2"][0])
    bslab = bslab.at[R_BE2, :E].set(p["be2"][0])
    return {"wslab": wslab, "bslab": bslab}


@jax.jit
def transformer_encoder_layer(src, pos, packed):
    """src, pos: (S, N, E) float32 (PyTorch MHA convention, batch_first=False)."""
    # Leading-dim collapse is a free reshape; the lane-concat of [x | pos] is a
    # tiny one-time XLA op that feeds the fused in-projection.
    x2 = src.reshape(SN, E)
    p2 = pos.reshape(SN, E)
    xp = jnp.concatenate([x2, p2], axis=1)          # (SN, 2E)
    vmem = pltpu.MemorySpace.VMEM
    out = pl.pallas_call(
        encoder_layer_kernel,
        out_shape=jax.ShapeDtypeStruct((SN, E), jnp.float32),
        in_specs=[pl.BlockSpec(memory_space=vmem),
                  pl.BlockSpec(memory_space=vmem),
                  pl.BlockSpec(memory_space=vmem)],
        out_specs=pl.BlockSpec(memory_space=vmem),
    )(xp, packed["wslab"], packed["bslab"])
    return out.reshape(S, N, E)


# --------------------------- pure-JAX reference -----------------------------
def reference_forward(src, pos, params):
    x = src                                        # (S, N, E)
    qk = x + pos
    q = jnp.einsum("sne,ef->snf", qk, params["wq"]) + params["bq"][0]
    k = jnp.einsum("sne,ef->snf", qk, params["wk"]) + params["bk"][0]
    v = jnp.einsum("sne,ef->snf", x, params["wv"]) + params["bv"][0]
    qh = q.reshape(S, N, NHEAD, HD)
    kh = k.reshape(S, N, NHEAD, HD)
    vh = v.reshape(S, N, NHEAD, HD)
    scores = jnp.einsum("snhd,tnhd->nhst", qh, kh) / (HD ** 0.5)
    attn = jax.nn.softmax(scores, axis=-1)
    o = jnp.einsum("nhst,tnhd->snhd", attn, vh).reshape(S, N, E)
    src2 = jnp.einsum("sne,ef->snf", o, params["wo"]) + params["bo"][0]
    src = x + src2
    mu = src.mean(-1, keepdims=True)
    var = ((src - mu) ** 2).mean(-1, keepdims=True)
    src = (src - mu) / jnp.sqrt(var + LN_EPS) * params["g1"][0] + params["be1"][0]
    h1 = jax.nn.relu(jnp.einsum("sne,ef->snf", src, params["w1"]) + params["b1"][0])
    src2 = jnp.einsum("snf,fe->sne", h1, params["w2"]) + params["b2"][0]
    src = src + src2
    mu = src.mean(-1, keepdims=True)
    var = ((src - mu) ** 2).mean(-1, keepdims=True)
    src = (src - mu) / jnp.sqrt(var + LN_EPS) * params["g2"][0] + params["be2"][0]
    return src


# ------------------------------- main ---------------------------------------
if __name__ == "__main__":
    key = jax.random.PRNGKey(0)
    ks = jax.random.split(key, 16)

    def rnd(k, shape, scale=0.05):
        return jax.random.normal(k, shape, dtype=jnp.float32) * scale

    # nn.MultiheadAttention: in_proj_weight (3E, E) split into q/k/v, stored here
    # pre-transposed to (in, out); same for out_proj / linear1 / linear2.
    raw = {
        "wq": rnd(ks[0], (E, E)), "wk": rnd(ks[1], (E, E)), "wv": rnd(ks[2], (E, E)),
        "bq": rnd(ks[3], (1, E)), "bk": rnd(ks[4], (1, E)), "bv": rnd(ks[5], (1, E)),
        "wo": rnd(ks[6], (E, E)), "bo": rnd(ks[7], (1, E)),
        "w1": rnd(ks[8], (E, F)), "b1": rnd(ks[9], (1, F)),
        "w2": rnd(ks[10], (F, E)), "b2": rnd(ks[11], (1, E)),
        "g1": jnp.ones((1, E), jnp.float32), "be1": jnp.zeros((1, E), jnp.float32),
        "g2": jnp.ones((1, E), jnp.float32), "be2": jnp.zeros((1, E), jnp.float32),
    }
    packed = pack_params(raw)

    src = jax.random.normal(ks[12], (S, N, E), dtype=jnp.float32)
    pos = jax.random.normal(ks[13], (S, N, E), dtype=jnp.float32) * 0.1

    out = transformer_encoder_layer(src, pos, packed)
    out = jax.block_until_ready(out)

    ref = reference_forward(src, pos, raw)
    assert out.shape == (S, N, E)
    err = float(jnp.max(jnp.abs(out - ref)))
    # tolerance reflects bf16 MXU operands (f32 accumulation) on ~unit-scale outputs
    assert err < 5e-3, f"max abs error {err}"

    print("KERNEL_OK")
</pallas_src>

<mosaic_0001>
module attributes {stable_mosaic.version = 11 : i64} {
  func.func @encoder_layer_kernel(%arg0: memref<16x64xf32, #tpu.memory_space<vmem>>, %arg1: memref<192x96xbf16, #tpu.memory_space<vmem>>, %arg2: memref<8x96xf32, #tpu.memory_space<vmem>>, %arg3: memref<16x32xf32, #tpu.memory_space<vmem>>) attributes {dimension_semantics = [], scalar_prefetch = 0 : i64, scratch_operands = 0 : i64, tpu.core_type = #tpu.core_type<tc>} {
    %c0 = arith.constant 0 : index
    %c0_0 = arith.constant 0 : index
    %0 = vector.load %arg0[%c0, %c0_0] : memref<16x64xf32, #tpu.memory_space<vmem>>, vector<16x64xf32>
    %1 = vector.extract_strided_slice %0 {offsets = [0, 0], sizes = [16, 32], strides = [1, 1]} : vector<16x64xf32> to vector<16x32xf32>
    %c0_1 = arith.constant 0 : index
    %c0_2 = arith.constant 0 : index
    %2 = vector.load %arg2[%c0_1, %c0_2] : memref<8x96xf32, #tpu.memory_space<vmem>>, vector<1x96xf32>
    %c1 = arith.constant 1 : index
    %c0_3 = arith.constant 0 : index
    %3 = vector.load %arg2[%c1, %c0_3] : memref<8x96xf32, #tpu.memory_space<vmem>>, vector<1x32xf32>
    %c2 = arith.constant 2 : index
    %c0_4 = arith.constant 0 : index
    %4 = vector.load %arg2[%c2, %c0_4] : memref<8x96xf32, #tpu.memory_space<vmem>>, vector<1x64xf32>
    %c3 = arith.constant 3 : index
    %c0_5 = arith.constant 0 : index
    %5 = vector.load %arg2[%c3, %c0_5] : memref<8x96xf32, #tpu.memory_space<vmem>>, vector<1x32xf32>
    %c4 = arith.constant 4 : index
    %c0_6 = arith.constant 0 : index
    %6 = vector.load %arg2[%c4, %c0_6] : memref<8x96xf32, #tpu.memory_space<vmem>>, vector<1x32xf32>
    %c5 = arith.constant 5 : index
    %c0_7 = arith.constant 0 : index
    %7 = vector.load %arg2[%c5, %c0_7] : memref<8x96xf32, #tpu.memory_space<vmem>>, vector<1x32xf32>
    %c6 = arith.constant 6 : index
    %c0_8 = arith.constant 0 : index
    %8 = vector.load %arg2[%c6, %c0_8] : memref<8x96xf32, #tpu.memory_space<vmem>>, vector<1x32xf32>
    %c7 = arith.constant 7 : index
    %c0_9 = arith.constant 0 : index
    %9 = vector.load %arg2[%c7, %c0_9] : memref<8x96xf32, #tpu.memory_space<vmem>>, vector<1x32xf32>
    %c0_10 = arith.constant 0 : index
    %c0_11 = arith.constant 0 : index
    %10 = vector.load %arg1[%c0_10, %c0_11] : memref<192x96xbf16, #tpu.memory_space<vmem>>, vector<64x96xbf16>
    %11 = arith.truncf %0 : vector<16x64xf32> to vector<16x64xbf16>
    %cst = arith.constant dense<0.000000e+00> : vector<16x96xf32>
    %12 = tpu.matmul %11, %10, %cst {dimension_numbers = #tpu.dot_dimension_numbers<[1], [0], [0], [1], [0, 0, 1, 1], [], []>} : vector<16x64xbf16>, vector<64x96xbf16>, vector<16x96xf32> -> vector<16x96xf32>
    %13 = vector.broadcast %2 : vector<1x96xf32> to vector<16x96xf32>
    %14 = arith.addf %12, %13 : vector<16x96xf32>
    %15 = vector.extract_strided_slice %14 {offsets = [0, 0], sizes = [16, 32], strides = [1, 1]} : vector<16x96xf32> to vector<16x32xf32>
    %16 = arith.truncf %15 : vector<16x32xf32> to vector<16x32xbf16>
    %17 = vector.extract_strided_slice %14 {offsets = [0, 32], sizes = [16, 32], strides = [1, 1]} : vector<16x96xf32> to vector<16x32xf32>
    %18 = arith.truncf %17 : vector<16x32xf32> to vector<16x32xbf16>
    %19 = vector.extract_strided_slice %14 {offsets = [0, 64], sizes = [16, 32], strides = [1, 1]} : vector<16x96xf32> to vector<16x32xf32>
    %20 = arith.truncf %19 : vector<16x32xf32> to vector<16x32xbf16>
    %21 = tpu.iota {dimensions = array<i32: 0>} : vector<16x16xi32>
    %22 = tpu.iota {dimensions = array<i32: 1>} : vector<16x16xi32>
    %c2_i32 = arith.constant 2 : i32
    %c0_i32 = arith.constant 0 : i32
    %23 = arith.cmpi eq, %c2_i32, %c0_i32 : i32
    %c1_i32 = arith.constant 1 : i32
    %24 = arith.select %23, %c1_i32, %c2_i32 : i32
    %25 = vector.broadcast %24 : i32 to vector<16x16xi32>
    %26 = arith.remsi %21, %25 : vector<16x16xi32>
    %c0_i32_12 = arith.constant 0 : i32
    %27 = vector.broadcast %c0_i32_12 : i32 to vector<16x16xi32>
    %28 = arith.cmpi ne, %26, %27 : vector<16x16xi32>
    %c0_i32_13 = arith.constant 0 : i32
    %29 = vector.broadcast %c0_i32_13 : i32 to vector<16x16xi32>
    %30 = arith.cmpi slt, %26, %29 : vector<16x16xi32>
    %c0_i32_14 = arith.constant 0 : i32
    %31 = arith.cmpi slt, %24, %c0_i32_14 : i32
    %32 = vector.broadcast %31 : i1 to vector<16x16xi1>
    %33 = vector.broadcast %32 : vector<16x16xi1> to vector<16x16xi1>
    %34 = arith.xori %30, %33 : vector<16x16xi1>
    %35 = arith.andi %34, %28 : vector<16x16xi1>
    %36 = vector.broadcast %24 : i32 to vector<16x16xi32>
    %37 = arith.addi %26, %36 : vector<16x16xi32>
    %38 = arith.select %35, %37, %26 : vector<16x16xi1>, vector<16x16xi32>
    %c2_i32_15 = arith.constant 2 : i32
    %c0_i32_16 = arith.constant 0 : i32
    %39 = arith.cmpi eq, %c2_i32_15, %c0_i32_16 : i32
    %c1_i32_17 = arith.constant 1 : i32
    %40 = arith.select %39, %c1_i32_17, %c2_i32_15 : i32
    %41 = vector.broadcast %40 : i32 to vector<16x16xi32>
    %42 = arith.remsi %22, %41 : vector<16x16xi32>
    %c0_i32_18 = arith.constant 0 : i32
    %43 = vector.broadcast %c0_i32_18 : i32 to vector<16x16xi32>
    %44 = arith.cmpi ne, %42, %43 : vector<16x16xi32>
    %c0_i32_19 = arith.constant 0 : i32
    %45 = vector.broadcast %c0_i32_19 : i32 to vector<16x16xi32>
    %46 = arith.cmpi slt, %42, %45 : vector<16x16xi32>
    %c0_i32_20 = arith.constant 0 : i32
    %47 = arith.cmpi slt, %40, %c0_i32_20 : i32
    %48 = vector.broadcast %47 : i1 to vector<16x16xi1>
    %49 = vector.broadcast %48 : vector<16x16xi1> to vector<16x16xi1>
    %50 = arith.xori %46, %49 : vector<16x16xi1>
    %51 = arith.andi %50, %44 : vector<16x16xi1>
    %52 = vector.broadcast %40 : i32 to vector<16x16xi32>
    %53 = arith.addi %42, %52 : vector<16x16xi32>
    %54 = arith.select %51, %53, %42 : vector<16x16xi1>, vector<16x16xi32>
    %55 = arith.cmpi eq, %38, %54 : vector<16x16xi32>
    %cst_21 = arith.constant 0.000000e+00 : f32
    %cst_22 = arith.constant -1.000000e+30 : f32
    %56 = vector.broadcast %cst_21 : f32 to vector<16x16xf32>
    %57 = vector.broadcast %cst_22 : f32 to vector<16x16xf32>
    %58 = arith.select %55, %56, %57 : vector<16x16xi1>, vector<16x16xf32>
    %59 = vector.extract_strided_slice %16 {offsets = [0, 0], sizes = [16, 8], strides = [1, 1]} : vector<16x32xbf16> to vector<16x8xbf16>
    %60 = vector.extract_strided_slice %18 {offsets = [0, 0], sizes = [16, 8], strides = [1, 1]} : vector<16x32xbf16> to vector<16x8xbf16>
    %61 = vector.extract_strided_slice %20 {offsets = [0, 0], sizes = [16, 8], strides = [1, 1]} : vector<16x32xbf16> to vector<16x8xbf16>
    %cst_23 = arith.constant dense<0.000000e+00> : vector<16x16xf32>
    %62 = tpu.matmul %59, %60, %cst_23 {dimension_numbers = #tpu.dot_dimension_numbers<[1], [1], [0], [0], [0, 0, 1, 0], [], []>} : vector<16x8xbf16>, vector<16x8xbf16>, vector<16x16xf32> -> vector<16x16xf32>
    %63 = arith.addf %62, %58 : vector<16x16xf32>
    %cst_24 = arith.constant dense<0xFF800000> : vector<16xf32>
    %64 = vector.multi_reduction <maximumf>, %63, %cst_24 [1] : vector<16x16xf32> to vector<16xf32>
    %65 = vector.shape_cast %64 : vector<16xf32> to vector<16x1xf32>
    %66 = vector.broadcast %65 : vector<16x1xf32> to vector<16x16xf32>
    %67 = arith.subf %63, %66 : vector<16x16xf32>
    %68 = math.exp %67 : vector<16x16xf32>
    %cst_25 = arith.constant dense<0.000000e+00> : vector<16xf32>
    %69 = vector.multi_reduction <add>, %68, %cst_25 [1] : vector<16x16xf32> to vector<16xf32>
    %70 = vector.shape_cast %69 : vector<16xf32> to vector<16x1xf32>
    %71 = vector.broadcast %70 : vector<16x1xf32> to vector<16x16xf32>
    %72 = arith.divf %68, %71 : vector<16x16xf32>
    %73 = arith.truncf %72 : vector<16x16xf32> to vector<16x16xbf16>
    %cst_26 = arith.constant dense<0.000000e+00> : vector<16x8xf32>
    %74 = tpu.matmul %73, %61, %cst_26 {dimension_numbers = #tpu.dot_dimension_numbers<[1], [0], [0], [1], [0, 0, 1, 1], [], []>} : vector<16x16xbf16>, vector<16x8xbf16>, vector<16x8xf32> -> vector<16x8xf32>
    %75 = vector.extract_strided_slice %16 {offsets = [0, 8], sizes = [16, 8], strides = [1, 1]} : vector<16x32xbf16> to vector<16x8xbf16>
    %76 = vector.extract_strided_slice %18 {offsets = [0, 8], sizes = [16, 8], strides = [1, 1]} : vector<16x32xbf16> to vector<16x8xbf16>
    %77 = vector.extract_strided_slice %20 {offsets = [0, 8], sizes = [16, 8], strides = [1, 1]} : vector<16x32xbf16> to vector<16x8xbf16>
    %cst_27 = arith.constant dense<0.000000e+00> : vector<16x16xf32>
    %78 = tpu.matmul %75, %76, %cst_27 {dimension_numbers = #tpu.dot_dimension_numbers<[1], [1], [0], [0], [0, 0, 1, 0], [], []>} : vector<16x8xbf16>, vector<16x8xbf16>, vector<16x16xf32> -> vector<16x16xf32>
    %79 = arith.addf %78, %58 : vector<16x16xf32>
    %cst_28 = arith.constant dense<0xFF800000> : vector<16xf32>
    %80 = vector.multi_reduction <maximumf>, %79, %cst_28 [1] : vector<16x16xf32> to vector<16xf32>
    %81 = vector.shape_cast %80 : vector<16xf32> to vector<16x1xf32>
    %82 = vector.broadcast %81 : vector<16x1xf32> to vector<16x16xf32>
    %83 = arith.subf %79, %82 : vector<16x16xf32>
    %84 = math.exp %83 : vector<16x16xf32>
    %cst_29 = arith.constant dense<0.000000e+00> : vector<16xf32>
    %85 = vector.multi_reduction <add>, %84, %cst_29 [1] : vector<16x16xf32> to vector<16xf32>
    %86 = vector.shape_cast %85 : vector<16xf32> to vector<16x1xf32>
    %87 = vector.broadcast %86 : vector<16x1xf32> to vector<16x16xf32>
    %88 = arith.divf %84, %87 : vector<16x16xf32>
    %89 = arith.truncf %88 : vector<16x16xf32> to vector<16x16xbf16>
    %cst_30 = arith.constant dense<0.000000e+00> : vector<16x8xf32>
    %90 = tpu.matmul %89, %77, %cst_30 {dimension_numbers = #tpu.dot_dimension_numbers<[1], [0], [0], [1], [0, 0, 1, 1], [], []>} : vector<16x16xbf16>, vector<16x8xbf16>, vector<16x8xf32> -> vector<16x8xf32>
    %91 = vector.extract_strided_slice %16 {offsets = [0, 16], sizes = [16, 8], strides = [1, 1]} : vector<16x32xbf16> to vector<16x8xbf16>
    %92 = vector.extract_strided_slice %18 {offsets = [0, 16], sizes = [16, 8], strides = [1, 1]} : vector<16x32xbf16> to vector<16x8xbf16>
    %93 = vector.extract_strided_slice %20 {offsets = [0, 16], sizes = [16, 8], strides = [1, 1]} : vector<16x32xbf16> to vector<16x8xbf16>
    %cst_31 = arith.constant dense<0.000000e+00> : vector<16x16xf32>
    %94 = tpu.matmul %91, %92, %cst_31 {dimension_numbers = #tpu.dot_dimension_numbers<[1], [1], [0], [0], [0, 0, 1, 0], [], []>} : vector<16x8xbf16>, vector<16x8xbf16>, vector<16x16xf32> -> vector<16x16xf32>
    %95 = arith.addf %94, %58 : vector<16x16xf32>
    %cst_32 = arith.constant dense<0xFF800000> : vector<16xf32>
    %96 = vector.multi_reduction <maximumf>, %95, %cst_32 [1] : vector<16x16xf32> to vector<16xf32>
    %97 = vector.shape_cast %96 : vector<16xf32> to vector<16x1xf32>
    %98 = vector.broadcast %97 : vector<16x1xf32> to vector<16x16xf32>
    %99 = arith.subf %95, %98 : vector<16x16xf32>
    %100 = math.exp %99 : vector<16x16xf32>
    %cst_33 = arith.constant dense<0.000000e+00> : vector<16xf32>
    %101 = vector.multi_reduction <add>, %100, %cst_33 [1] : vector<16x16xf32> to vector<16xf32>
    %102 = vector.shape_cast %101 : vector<16xf32> to vector<16x1xf32>
    %103 = vector.broadcast %102 : vector<16x1xf32> to vector<16x16xf32>
    %104 = arith.divf %100, %103 : vector<16x16xf32>
    %105 = arith.truncf %104 : vector<16x16xf32> to vector<16x16xbf16>
    %cst_34 = arith.constant dense<0.000000e+00> : vector<16x8xf32>
    %106 = tpu.matmul %105, %93, %cst_34 {dimension_numbers = #tpu.dot_dimension_numbers<[1], [0], [0], [1], [0, 0, 1, 1], [], []>} : vector<16x16xbf16>, vector<16x8xbf16>, vector<16x8xf32> -> vector<16x8xf32>
    %107 = vector.extract_strided_slice %16 {offsets = [0, 24], sizes = [16, 8], strides = [1, 1]} : vector<16x32xbf16> to vector<16x8xbf16>
    %108 = vector.extract_strided_slice %18 {offsets = [0, 24], sizes = [16, 8], strides = [1, 1]} : vector<16x32xbf16> to vector<16x8xbf16>
    %109 = vector.extract_strided_slice %20 {offsets = [0, 24], sizes = [16, 8], strides = [1, 1]} : vector<16x32xbf16> to vector<16x8xbf16>
    %cst_35 = arith.constant dense<0.000000e+00> : vector<16x16xf32>
    %110 = tpu.matmul %107, %108, %cst_35 {dimension_numbers = #tpu.dot_dimension_numbers<[1], [1], [0], [0], [0, 0, 1, 0], [], []>} : vector<16x8xbf16>, vector<16x8xbf16>, vector<16x16xf32> -> vector<16x16xf32>
    %111 = arith.addf %110, %58 : vector<16x16xf32>
    %cst_36 = arith.constant dense<0xFF800000> : vector<16xf32>
    %112 = vector.multi_reduction <maximumf>, %111, %cst_36 [1] : vector<16x16xf32> to vector<16xf32>
    %113 = vector.shape_cast %112 : vector<16xf32> to vector<16x1xf32>
    %114 = vector.broadcast %113 : vector<16x1xf32> to vector<16x16xf32>
    %115 = arith.subf %111, %114 : vector<16x16xf32>
    %116 = math.exp %115 : vector<16x16xf32>
    %cst_37 = arith.constant dense<0.000000e+00> : vector<16xf32>
    %117 = vector.multi_reduction <add>, %116, %cst_37 [1] : vector<16x16xf32> to vector<16xf32>
    %118 = vector.shape_cast %117 : vector<16xf32> to vector<16x1xf32>
    %119 = vector.broadcast %118 : vector<16x1xf32> to vector<16x16xf32>
    %120 = arith.divf %116, %119 : vector<16x16xf32>
    %121 = arith.truncf %120 : vector<16x16xf32> to vector<16x16xbf16>
    %cst_38 = arith.constant dense<0.000000e+00> : vector<16x8xf32>
    %122 = tpu.matmul %121, %109, %cst_38 {dimension_numbers = #tpu.dot_dimension_numbers<[1], [0], [0], [1], [0, 0, 1, 1], [], []>} : vector<16x16xbf16>, vector<16x8xbf16>, vector<16x8xf32> -> vector<16x8xf32>
    %123 = tpu.concatenate %74, %90, %106, %122 in 1 : vector<16x8xf32>, vector<16x8xf32>, vector<16x8xf32>, vector<16x8xf32> -> vector<16x32xf32>
    %c64 = arith.constant 64 : index
    %c0_39 = arith.constant 0 : index
    %124 = vector.load %arg1[%c64, %c0_39] : memref<192x96xbf16, #tpu.memory_space<vmem>>, vector<32x32xbf16>
    %125 = arith.truncf %123 : vector<16x32xf32> to vector<16x32xbf16>
    %cst_40 = arith.constant dense<0.000000e+00> : vector<16x32xf32>
    %126 = tpu.matmul %125, %124, %cst_40 {dimension_numbers = #tpu.dot_dimension_numbers<[1], [0], [0], [1], [0, 0, 1, 1], [], []>} : vector<16x32xbf16>, vector<32x32xbf16>, vector<16x32xf32> -> vector<16x32xf32>
    %127 = vector.broadcast %3 : vector<1x32xf32> to vector<16x32xf32>
    %128 = arith.addf %126, %127 : vector<16x32xf32>
    %129 = arith.addf %1, %128 : vector<16x32xf32>
    %cst_41 = arith.constant dense<0.000000e+00> : vector<16xf32>
    %130 = vector.multi_reduction <add>, %129, %cst_41 [1] : vector<16x32xf32> to vector<16xf32>
    %131 = vector.shape_cast %130 : vector<16xf32> to vector<16x1xf32>
    %cst_42 = arith.constant 3.200000e+01 : f32
    %132 = vector.broadcast %cst_42 : f32 to vector<16x1xf32>
    %133 = arith.divf %131, %132 : vector<16x1xf32>
    %134 = vector.broadcast %133 : vector<16x1xf32> to vector<16x32xf32>
    %135 = arith.subf %129, %134 : vector<16x32xf32>
    %136 = arith.mulf %135, %135 : vector<16x32xf32>
    %cst_43 = arith.constant dense<0.000000e+00> : vector<16xf32>
    %137 = vector.multi_reduction <add>, %136, %cst_43 [1] : vector<16x32xf32> to vector<16xf32>
    %138 = vector.shape_cast %137 : vector<16xf32> to vector<16x1xf32>
    %cst_44 = arith.constant 3.200000e+01 : f32
    %139 = vector.broadcast %cst_44 : f32 to vector<16x1xf32>
    %140 = arith.divf %138, %139 : vector<16x1xf32>
    %141 = vector.broadcast %133 : vector<16x1xf32> to vector<16x32xf32>
    %142 = arith.subf %129, %141 : vector<16x32xf32>
    %cst_45 = arith.constant 9.99999974E-6 : f32
    %143 = vector.broadcast %cst_45 : f32 to vector<16x1xf32>
    %144 = arith.addf %140, %143 : vector<16x1xf32>
    %145 = math.rsqrt %144 : vector<16x1xf32>
    %146 = vector.broadcast %145 : vector<16x1xf32> to vector<16x32xf32>
    %147 = arith.mulf %142, %146 : vector<16x32xf32>
    %148 = vector.broadcast %6 : vector<1x32xf32> to vector<16x32xf32>
    %149 = arith.mulf %147, %148 : vector<16x32xf32>
    %150 = vector.broadcast %7 : vector<1x32xf32> to vector<16x32xf32>
    %151 = arith.addf %149, %150 : vector<16x32xf32>
    %c96 = arith.constant 96 : index
    %c0_46 = arith.constant 0 : index
    %152 = vector.load %arg1[%c96, %c0_46] : memref<192x96xbf16, #tpu.memory_space<vmem>>, vector<32x64xbf16>
    %c128 = arith.constant 128 : index
    %c0_47 = arith.constant 0 : index
    %153 = vector.load %arg1[%c128, %c0_47] : memref<192x96xbf16, #tpu.memory_space<vmem>>, vector<64x32xbf16>
    %154 = arith.truncf %151 : vector<16x32xf32> to vector<16x32xbf16>
    %cst_48 = arith.constant dense<0.000000e+00> : vector<16x64xf32>
    %155 = tpu.matmul %154, %152, %cst_48 {dimension_numbers = #tpu.dot_dimension_numbers<[1], [0], [0], [1], [0, 0, 1, 1], [], []>} : vector<16x32xbf16>, vector<32x64xbf16>, vector<16x64xf32> -> vector<16x64xf32>
    %156 = vector.broadcast %4 : vector<1x64xf32> to vector<16x64xf32>
    %157 = arith.addf %155, %156 : vector<16x64xf32>
    %cst_49 = arith.constant 0.000000e+00 : f32
    %158 = vector.broadcast %cst_49 : f32 to vector<16x64xf32>
    %159 = arith.maximumf %157, %158 : vector<16x64xf32>
    %160 = arith.truncf %159 : vector<16x64xf32> to vector<16x64xbf16>
    %cst_50 = arith.constant dense<0.000000e+00> : vector<16x32xf32>
    %161 = tpu.matmul %160, %153, %cst_50 {dimension_numbers = #tpu.dot_dimension_numbers<[1], [0], [0], [1], [0, 0, 1, 1], [], []>} : vector<16x64xbf16>, vector<64x32xbf16>, vector<16x32xf32> -> vector<16x32xf32>
    %162 = vector.broadcast %5 : vector<1x32xf32> to vector<16x32xf32>
    %163 = arith.addf %161, %162 : vector<16x32xf32>
    %164 = arith.addf %151, %163 : vector<16x32xf32>
    %cst_51 = arith.constant dense<0.000000e+00> : vector<16xf32>
    %165 = vector.multi_reduction <add>, %164, %cst_51 [1] : vector<16x32xf32> to vector<16xf32>
    %166 = vector.shape_cast %165 : vector<16xf32> to vector<16x1xf32>
    %cst_52 = arith.constant 3.200000e+01 : f32
    %167 = vector.broadcast %cst_52 : f32 to vector<16x1xf32>
    %168 = arith.divf %166, %167 : vector<16x1xf32>
    %169 = vector.broadcast %168 : vector<16x1xf32> to vector<16x32xf32>
    %170 = arith.subf %164, %169 : vector<16x32xf32>
    %171 = arith.mulf %170, %170 : vector<16x32xf32>
    %cst_53 = arith.constant dense<0.000000e+00> : vector<16xf32>
    %172 = vector.multi_reduction <add>, %171, %cst_53 [1] : vector<16x32xf32> to vector<16xf32>
    %173 = vector.shape_cast %172 : vector<16xf32> to vector<16x1xf32>
    %cst_54 = arith.constant 3.200000e+01 : f32
    %174 = vector.broadcast %cst_54 : f32 to vector<16x1xf32>
    %175 = arith.divf %173, %174 : vector<16x1xf32>
    %176 = vector.broadcast %168 : vector<16x1xf32> to vector<16x32xf32>
    %177 = arith.subf %164, %176 : vector<16x32xf32>
    %cst_55 = arith.constant 9.99999974E-6 : f32
    %178 = vector.broadcast %cst_55 : f32 to vector<16x1xf32>
    %179 = arith.addf %175, %178 : vector<16x1xf32>
    %180 = math.rsqrt %179 : vector<16x1xf32>
    %181 = vector.broadcast %180 : vector<16x1xf32> to vector<16x32xf32>
    %182 = arith.mulf %177, %181 : vector<16x32xf32>
    %183 = vector.broadcast %8 : vector<1x32xf32> to vector<16x32xf32>
    %184 = arith.mulf %182, %183 : vector<16x32xf32>
    %185 = vector.broadcast %9 : vector<1x32xf32> to vector<16x32xf32>
    %186 = arith.addf %184, %185 : vector<16x32xf32>
    %c0_56 = arith.constant 0 : index
    %c0_57 = arith.constant 0 : index
    %187 = vector.load %arg3[%c0_56, %c0_57] : memref<16x32xf32, #tpu.memory_space<vmem>>, vector<16x32xf32>
    tpu.vector_store %arg3[%c0_56, %c0_57], %186 {strides = array<i32>} : memref<16x32xf32, #tpu.memory_space<vmem>>, vector<16x32xf32>,
    return
  }
}

</mosaic_0001>

<llo_original>
// kernel: transformer_encoder_layer.1
$region0: #{transformer_encoder_layer.1}
  #allocation0 [shape = 'u32[]', space=smem, size = 0x4, offset = 0x4, fixed_abs, tag = 'smem constant byte address 0x4 - core index']
  #allocation1 [shape = 'u32[72,128]{1,0:T(1,128)}', space=vmem, size = 0x9000, scoped, tag = 'internal scratch']
  %s0 = inlined_call_operand.vmem [shape: f32[16,64], index: 0, kind: input, shape index: {}]
  %s1 = inlined_call_operand.hbm [shape: bf16[192,96], index: 1, kind: input, shape index: {}]
  %s2 = inlined_call_operand.vmem [shape: f32[8,96], index: 2, kind: input, shape index: {}]
  %s3 = inlined_call_operand.hbm [shape: f32[16,32], index: 3, kind: output, shape index: {}]
  %s4 = sld [smem:[#allocation0]]
  $region26: #{transformer_encoder_layer.1} parent=0
    _
  %s6 = ssub.s32 1, %s4
  %s7 = scalar_select 0, %s6, %s4
  $region1: #{transformer_encoder_layer.1} parent=0
    #allocation2 [shape = 'u8[49152]{0}', space=vmem, size = 0xc000, scoped, tag = 'input window, operand 1, single buffered']
    #allocation3 [shape = 's32[1]{0}', space=sflag, size = 0x4, scoped, tag = 'scoped memory for transformer_encoder_layer.1']
    #allocation4 [shape = 's32[1]{0}', space=sflag, size = 0x4, scoped, tag = 'scoped memory for transformer_encoder_layer.1']
    #allocation5 [shape = 'u8[8192]{0}', space=vmem, size = 0x2000, scoped, tag = 'output window, operand 0, single buffered']
    %8 = vsyncpa [#allocation3], 0
    %9 = vsyncpa [#allocation4], 0
    // Predicated region
    $region2: #{transformer_encoder_layer.1} parent=1 // pred_check
      _
    $region3: #{transformer_encoder_layer.1} parent=1 // pred_check_branch
      %11 = sbr.rel (0) target = $region5
    $region4: #{transformer_encoder_layer.1} parent=1 // pred_region
      _
    $region5: #{transformer_encoder_layer.1} parent=1 // pred_fallthru
      _
    // Predicated region
    $region6: #{transformer_encoder_layer.1} parent=1 // pred_check
      _
    $region7: #{transformer_encoder_layer.1} parent=1 // pred_check_branch
      %13 = sbr.rel (0) target = $region9
    $region8: #{transformer_encoder_layer.1} parent=1 // pred_region
      %15 = vsyncadd [#allocation3], 0
      %s16 = sshll.u32 %s1, 4
      %s17 = int_to_ptr.hbm [resolvable:$true] %s16
      %s18 = sshll.u32 [#allocation2], 4
      %s19 = int_to_ptr.vmem [resolvable:$true] %s18
      %24 = dma.hbm_to_vmem [thread:$0]  %s17, 1536, %s19, [#allocation3], 64, 64, 4
    $region9: #{transformer_encoder_layer.1} parent=1 // pred_fallthru
      _
    // Predicated region
    $region10: #{transformer_encoder_layer.1} parent=1 // pred_check
      _
    $region11: #{transformer_encoder_layer.1} parent=1 // pred_check_branch
      %26 = sbr.rel (0) target = $region13
    $region12: #{transformer_encoder_layer.1} parent=1 // pred_region
      _
    $region13: #{transformer_encoder_layer.1} parent=1 // pred_fallthru
      _
    // Predicated region
    $region14: #{transformer_encoder_layer.1} parent=1 // pred_check
      _
    $region15: #{transformer_encoder_layer.1} parent=1 // pred_check_branch
      %28 = sbr.rel (0) target = $region17
    $region16: #{transformer_encoder_layer.1} parent=1 // pred_region
      %30 = dma.done [#allocation3], 1536
    $region17: #{transformer_encoder_layer.1} parent=1 // pred_fallthru
      _
    %v32 = vld [vmem:[%s0] sm:$0xff]
    %v33 = vld [vmem:[%s0 + $0x8] sm:$0xff]
    %v34 = vld [vmem:[%s2] sm:$0x1]
    %v35 = vld [vmem:[%s2 + $0x1] sm:$0x1]
    %v36 = vld [vmem:[%s2 + $0x2] sm:$0x1]
    %v37 = vld [vmem:[%s2 + $0x3] sm:$0x1]
    %v38 = vld [vmem:[%s2 + $0x4] sm:$0x1]
    %v39 = vld [vmem:[%s2 + $0x5] sm:$0x1]
    %v40 = vld [vmem:[%s2 + $0x6] sm:$0x1]
    %v41 = vld [vmem:[%s2 + $0x7] sm:$0x1]
    %v42 = vld [vmem:[#allocation2] sm:$0xf]
    %v43 = vld [vmem:[#allocation2 + $0x4] sm:$0xf]
    %v44 = vld [vmem:[#allocation2 + $0x8] sm:$0xf]
    %v45 = vld [vmem:[#allocation2 + $0xc] sm:$0xf]
    %v46 = vld [vmem:[#allocation2 + $0x10] sm:$0xf]
    %v47 = vld [vmem:[#allocation2 + $0x14] sm:$0xf]
    %v48 = vld [vmem:[#allocation2 + $0x18] sm:$0xf]
    %v49 = vld [vmem:[#allocation2 + $0x1c] sm:$0xf]
    %v50 = vpack.c.bf16 %v33, %v32
    %v51 = vperm.slane %v34, 0
    %v60 = vunpack.c.l.b16 %v42
    %v61 = vunpack.c.l.b16 %v43
    %v62 = vunpack.c.l.b16 %v44
    %v63 = vunpack.c.l.b16 %v45
    %v64 = vunpack.c.l.b16 %v46
    %v65 = vunpack.c.l.b16 %v47
    %v66 = vunpack.c.l.b16 %v48
    %v67 = vunpack.c.l.b16 %v49
    %v68 = vpack.c.b16 %v61, %v60
    %v69 = vpack.c.b16 %v63, %v62
    %v70 = vpack.c.b16 %v65, %v64
    %v71 = vpack.c.b16 %v67, %v66
    %vm76 = vcmask 523264
    %v78 = vsel %vm76, %v50, 0
    %80 = vmatpush.bf16.msra.mxu0 0
    %81 = vmatpush.bf16.msra.mxu0 0
    %82 = vmatpush.bf16.msra.mxu0 0
    %83 = vmatpush.bf16.msra.mxu0 0
    %84 = vmatpush.bf16.msra.mxu0 %v71
    %85 = vmatpush.bf16.msra.mxu0 %v70
    %86 = vmatpush.bf16.msra.mxu0 %v69
    %87 = vmatpush.bf16.msra.mxu0 %v68
    %88 = vmatmul.bf16.gmra.mxu0 %v78
    %v89 = vpop.f32.mrf.mxu0
    %v90 = vadd.f32 %v51, %v89
    %v91 = vpop.f32.mrf.mxu0
    %v92 = vadd.f32 %v51, %v91
    %93 = vdwg.mxu0
    %v94 = vpack.c.bf16 %v90, %v90
    %v95 = vpack.c.bf16 %v92, %v92
    %v96 = vlaneseq
    %v97 = vshrl.u32 %v96, 7
    %v98 = vadd.s32 %v97, 8
    %v99 = vlaneseq
    %v100 = vand.u32 %v99, 127
    %vm101 = vcmp.lt.s32.totalorder %v97, 0
    %v102 = vsub.s32 0, %v97
    %v103 = vsel %vm101, %v102, %v97
    %v104 = vshrl.u32 %v103, 1
    %v105 = vand.u32 %v103, 1
    %v106 = vsub.s32 0, %v105
    %v107 = vsel %vm101, %v106, %v105
    %vm108 = vcmp.lt.s32.totalorder %v98, 0
    %v109 = vsub.s32 0, %v98
    %v110 = vsel %vm108, %v109, %v98
    %v111 = vshrl.u32 %v110, 1
    %v112 = vand.u32 %v110, 1
    %v113 = vsub.s32 0, %v112
    %v114 = vsel %vm108, %v113, %v112
    %vm115 = vcmp.ne.s32.totalorder %v107, 0
    %vm116 = vcmp.ne.s32.totalorder %v114, 0
    %vm117 = vcmp.lt.s32.totalorder %v107, 0
    %vm118 = vcmp.lt.s32.totalorder %v114, 0
    %vm119 = vmand %vm117, %vm115
    %vm120 = vmand %vm118, %vm116
    %v121 = vadd.s32 %v107, 2
    %v122 = vadd.s32 %v114, 2
    %v123 = vsel %vm119, %v121, %v107
    %v124 = vsel %vm120, %v122, %v114
    %vm125 = vcmp.lt.s32.totalorder %v100, 0
    %v126 = vsub.s32 0, %v100
    %v127 = vsel %vm125, %v126, %v100
    %v128 = vshrl.u32 %v127, 1
    %v129 = vand.u32 %v127, 1
    %v130 = vsub.s32 0, %v129
    %v131 = vsel %vm125, %v130, %v129
    %vm132 = vcmp.ne.s32.totalorder %v131, 0
    %vm133 = vcmp.lt.s32.totalorder %v131, 0
    %vm134 = vmand %vm133, %vm132
    %v135 = vadd.s32 %v131, 2
    %v136 = vsel %vm134, %v135, %v131
    %vm137 = vcmp.eq.s32.totalorder %v123, %v136
    %vm138 = vcmp.eq.s32.totalorder %v124, %v136
    %v139 = vsel %vm137, 0.0, -1e+30
    %v140 = vsel %vm138, 0.0, -1e+30
    %v143 = vunpack.c.l.b16 %v94
    %v144 = vunpack.c.l.b16 %v95
    %v145 = vpack.c.b16 %v144, %v143
    %146 = vrot.lane.b32.xlu0 %v145, 96
    %v147 = vpop.permute.xlu0 %146
    %vm148 = vcmask 64512
    %v150 = vsel %vm148, %v145, 0
    %v153 = vsel %vm148, %v147, 0
    %155 = vmatpush.bf16.xpose.msra.mxu0 0
    %156 = vmatpush.bf16.xpose.msra.mxu0 0
    %157 = vmatpush.bf16.xpose.msra.mxu0 0
    %158 = vmatpush.bf16.xpose.msra.mxu0 0
    %159 = vmatpush.bf16.xpose.msra.mxu0 0
    %160 = vmatpush.bf16.xpose.msra.mxu0 0
    %161 = vmatpush.bf16.xpose.msra.mxu0 0
    %162 = vmatpush.bf16.xpose.msra.mxu0 %v153
    %163 = vmatmul.bf16.gmra.mxu0 %v150
    %v164 = vpop.f32.mrf.mxu0
    %v165 = vadd.f32 %v139, %v164
    %v166 = vpop.f32.mrf.mxu0
    %v167 = vadd.f32 %v140, %v166
    %168 = vdwg.mxu0
    %vm169 = vcmask 130048
    %v170 = vsel %vm169, %v165, -inf
    %171 = vmax.xlane.f32.xlu0 %v170
    %v172 = vpop.xlane.xlu0 %171
    %v173 = vsel %vm169, %v167, -inf
    %174 = vmax.xlane.f32.xlu0 %v173
    %v175 = vpop.xlane.xlu0 %174
    %v176 = vsub.f32 %v165, %v172
    %v177 = vsub.f32 %v167, %v175
    %v178 = vmul.f32 %v176, 1.442695
    %v179 = vpow.pop %v178
    %v180 = vmul.f32 %v177, 1.442695
    %v181 = vpow.pop %v180
    %v182 = vsel %vm169, %v179, 0.0
    %183 = vadd.xlane.f32.xlu0 %v182
    %v184 = vpop.xlane.xlu0 %183
    %v185 = vsel %vm169, %v181, 0.0
    %186 = vadd.xlane.f32.xlu0 %v185
    %v187 = vpop.xlane.xlu0 %186
    %v188 = vrcp.pop %v184
    %v189 = vmul.f32 %v184, %v188
    %v190 = vsub.f32 1.0, %v189
    %v191 = vmul.f32 %v188, %v190
    %v192 = vadd.f32 %v188, %v191
    %vm193 = vweird.f32 %v184
    %vm194 = vweird.f32 %v188
    %vm195 = vmor %vm193, %vm194
    %v196 = vsel %vm195, %v188, %v192
    %v197 = vand.u32 2147483647, %v184
    %vm198 = vcmp.eq.f32.partialorder %v197, 8.507059e+37
    %v199 = vand.u32 %v184, 2147483648
    %v200 = vor.u32 1.1754944e-38, %v199
    %v201 = vsel %vm198, %v200, %v196
    %v202 = vmul.f32 %v179, %v201
    %v203 = vrcp.pop %v187
    %v204 = vmul.f32 %v187, %v203
    %v205 = vsub.f32 1.0, %v204
    %v206 = vmul.f32 %v203, %v205
    %v207 = vadd.f32 %v203, %v206
    %vm208 = vweird.f32 %v187
    %vm209 = vweird.f32 %v203
    %vm210 = vmor %vm208, %vm209
    %v211 = vsel %vm210, %v203, %v207
    %v212 = vand.u32 2147483647, %v187
    %vm213 = vcmp.eq.f32.partialorder %v212, 8.507059e+37
    %v214 = vand.u32 %v187, 2147483648
    %v215 = vor.u32 1.1754944e-38, %v214
    %v216 = vsel %vm213, %v215, %v211
    %v217 = vmul.f32 %v181, %v216
    %v218 = vpack.c.bf16 %v217, %v202
    %219 = vrot.lane.b32.xlu0 %v145, 64
    %v220 = vpop.permute.xlu0 %219
    %v223 = vsel %vm169, %v218, 0
    %225 = vmatpush.bf16.msra.mxu0 0
    %226 = vmatpush.bf16.msra.mxu0 0
    %227 = vmatpush.bf16.msra.mxu0 0
    %228 = vmatpush.bf16.msra.mxu0 0
    %229 = vmatpush.bf16.msra.mxu0 0
    %230 = vmatpush.bf16.msra.mxu0 0
    %231 = vmatpush.bf16.msra.mxu0 0
    %232 = vmatpush.bf16.msra.mxu0 %v220
    %233 = vmatmul.bf16.gmra.mxu0 %v223
    %v234 = vpop.f32.mrf.mxu0
    %v235 = vadd.f32 0.0, %v234
    %v236 = vpop.f32.mrf.mxu0
    %v237 = vadd.f32 0.0, %v236
    %238 = vdwg.mxu0
    %239 = vrot.lane.b32.xlu0 %v145, 120
    %v240 = vpop.permute.xlu0 %239
    %241 = vrot.lane.b32.xlu0 %v145, 88
    %v242 = vpop.permute.xlu0 %241
    %v244 = vsel %vm148, %v240, 0
    %v247 = vsel %vm148, %v242, 0
    %249 = vmatpush.bf16.xpose.msra.mxu0 0
    %250 = vmatpush.bf16.xpose.msra.mxu0 0
    %251 = vmatpush.bf16.xpose.msra.mxu0 0
    %252 = vmatpush.bf16.xpose.msra.mxu0 0
    %253 = vmatpush.bf16.xpose.msra.mxu0 0
    %254 = vmatpush.bf16.xpose.msra.mxu0 0
    %255 = vmatpush.bf16.xpose.msra.mxu0 0
    %256 = vmatpush.bf16.xpose.msra.mxu0 %v247
    %257 = vmatmul.bf16.gmra.mxu0 %v244
    %v258 = vpop.f32.mrf.mxu0
    %v259 = vadd.f32 %v139, %v258
    %v260 = vpop.f32.mrf.mxu0
    %v261 = vadd.f32 %v140, %v260
    %262 = vdwg.mxu0
    %v263 = vsel %vm169, %v259, -inf
    %264 = vmax.xlane.f32.xlu0 %v263
    %v265 = vpop.xlane.xlu0 %264
    %v266 = vsel %vm169, %v261, -inf
    %267 = vmax.xlane.f32.xlu0 %v266
    %v268 = vpop.xlane.xlu0 %267
    %v269 = vsub.f32 %v259, %v265
    %v270 = vsub.f32 %v261, %v268
    %v271 = vmul.f32 %v269, 1.442695
    %v272 = vpow.pop %v271
    %v273 = vmul.f32 %v270, 1.442695
    %v274 = vpow.pop %v273
    %v275 = vsel %vm169, %v272, 0.0
    %276 = vadd.xlane.f32.xlu0 %v275
    %v277 = vpop.xlane.xlu0 %276
    %v278 = vsel %vm169, %v274, 0.0
    %279 = vadd.xlane.f32.xlu0 %v278
    %v280 = vpop.xlane.xlu0 %279
    %v281 = vrcp.pop %v277
    %v282 = vmul.f32 %v277, %v281
    %v283 = vsub.f32 1.0, %v282
    %v284 = vmul.f32 %v281, %v283
    %v285 = vadd.f32 %v281, %v284
    %vm286 = vweird.f32 %v277
    %vm287 = vweird.f32 %v281
    %vm288 = vmor %vm286, %vm287
    %v289 = vsel %vm288, %v281, %v285
    %v290 = vand.u32 2147483647, %v277
    %vm291 = vcmp.eq.f32.partialorder %v290, 8.507059e+37
    %v292 = vand.u32 %v277, 2147483648
    %v293 = vor.u32 1.1754944e-38, %v292
    %v294 = vsel %vm291, %v293, %v289
    %v295 = vmul.f32 %v272, %v294
    %v296 = vrcp.pop %v280
    %v297 = vmul.f32 %v280, %v296
    %v298 = vsub.f32 1.0, %v297
    %v299 = vmul.f32 %v296, %v298
    %v300 = vadd.f32 %v296, %v299
    %vm301 = vweird.f32 %v280
    %vm302 = vweird.f32 %v296
    %vm303 = vmor %vm301, %vm302
    %v304 = vsel %vm303, %v296, %v300
    %v305 = vand.u32 2147483647, %v280
    %vm306 = vcmp.eq.f32.partialorder %v305, 8.507059e+37
    %v307 = vand.u32 %v280, 2147483648
    %v308 = vor.u32 1.1754944e-38, %v307
    %v309 = vsel %vm306, %v308, %v304
    %v310 = vmul.f32 %v274, %v309
    %v311 = vpack.c.bf16 %v310, %v295
    %312 = vrot.lane.b32.xlu0 %v145, 56
    %v313 = vpop.permute.xlu0 %312
    %v316 = vsel %vm169, %v311, 0
    %318 = vmatpush.bf16.msra.mxu0 0
    %319 = vmatpush.bf16.msra.mxu0 0
    %320 = vmatpush.bf16.msra.mxu0 0
    %321 = vmatpush.bf16.msra.mxu0 0
    %322 = vmatpush.bf16.msra.mxu0 0
    %323 = vmatpush.bf16.msra.mxu0 0
    %324 = vmatpush.bf16.msra.mxu0 0
    %325 = vmatpush.bf16.msra.mxu0 %v313
    %326 = vmatmul.bf16.gmra.mxu0 %v316
    %v327 = vpop.f32.mrf.mxu0
    %v328 = vadd.f32 0.0, %v327
    %v329 = vpop.f32.mrf.mxu0
    %v330 = vadd.f32 0.0, %v329
    %331 = vdwg.mxu0
    %332 = vrot.lane.b32.xlu0 %v145, 112
    %v333 = vpop.permute.xlu0 %332
    %334 = vrot.lane.b32.xlu0 %v145, 80
    %v335 = vpop.permute.xlu0 %334
    %v337 = vsel %vm148, %v333, 0
    %v340 = vsel %vm148, %v335, 0
    %342 = vmatpush.bf16.xpose.msra.mxu0 0
    %343 = vmatpush.bf16.xpose.msra.mxu0 0
    %344 = vmatpush.bf16.xpose.msra.mxu0 0
    %345 = vmatpush.bf16.xpose.msra.mxu0 0
    %346 = vmatpush.bf16.xpose.msra.mxu0 0
    %347 = vmatpush.bf16.xpose.msra.mxu0 0
    %348 = vmatpush.bf16.xpose.msra.mxu0 0
    %349 = vmatpush.bf16.xpose.msra.mxu0 %v340
    %350 = vmatmul.bf16.gmra.mxu0 %v337
    %v351 = vpop.f32.mrf.mxu0
    %v352 = vadd.f32 %v139, %v351
    %v353 = vpop.f32.mrf.mxu0
    %v354 = vadd.f32 %v140, %v353
    %355 = vdwg.mxu0
    %v356 = vsel %vm169, %v352, -inf
    %357 = vmax.xlane.f32.xlu0 %v356
    %v358 = vpop.xlane.xlu0 %357
    %v359 = vsel %vm169, %v354, -inf
    %360 = vmax.xlane.f32.xlu0 %v359
    %v361 = vpop.xlane.xlu0 %360
    %v362 = vsub.f32 %v352, %v358
    %v363 = vsub.f32 %v354, %v361
    %v364 = vmul.f32 %v362, 1.442695
    %v365 = vpow.pop %v364
    %v366 = vmul.f32 %v363, 1.442695
    %v367 = vpow.pop %v366
    %v368 = vsel %vm169, %v365, 0.0
    %369 = vadd.xlane.f32.xlu0 %v368
    %v370 = vpop.xlane.xlu0 %369
    %v371 = vsel %vm169, %v367, 0.0
    %372 = vadd.xlane.f32.xlu0 %v371
    %v373 = vpop.xlane.xlu0 %372
    %v374 = vrcp.pop %v370
    %v375 = vmul.f32 %v370, %v374
    %v376 = vsub.f32 1.0, %v375
    %v377 = vmul.f32 %v374, %v376
    %v378 = vadd.f32 %v374, %v377
    %vm379 = vweird.f32 %v370
    %vm380 = vweird.f32 %v374
    %vm381 = vmor %vm379, %vm380
    %v382 = vsel %vm381, %v374, %v378
    %v383 = vand.u32 2147483647, %v370
    %vm384 = vcmp.eq.f32.partialorder %v383, 8.507059e+37
    %v385 = vand.u32 %v370, 2147483648
    %v386 = vor.u32 1.1754944e-38, %v385
    %v387 = vsel %vm384, %v386, %v382
    %v388 = vmul.f32 %v365, %v387
    %v389 = vrcp.pop %v373
    %v390 = vmul.f32 %v373, %v389
    %v391 = vsub.f32 1.0, %v390
    %v392 = vmul.f32 %v389, %v391
    %v393 = vadd.f32 %v389, %v392
    %vm394 = vweird.f32 %v373
    %vm395 = vweird.f32 %v389
    %vm396 = vmor %vm394, %vm395
    %v397 = vsel %vm396, %v389, %v393
    %v398 = vand.u32 2147483647, %v373
    %vm399 = vcmp.eq.f32.partialorder %v398, 8.507059e+37
    %v400 = vand.u32 %v373, 2147483648
    %v401 = vor.u32 1.1754944e-38, %v400
    %v402 = vsel %vm399, %v401, %v397
    %v403 = vmul.f32 %v367, %v402
    %v404 = vpack.c.bf16 %v403, %v388
    %405 = vrot.lane.b32.xlu0 %v145, 48
    %v406 = vpop.permute.xlu0 %405
    %v409 = vsel %vm169, %v404, 0
    %411 = vmatpush.bf16.msra.mxu0 0
    %412 = vmatpush.bf16.msra.mxu0 0
    %413 = vmatpush.bf16.msra.mxu0 0
    %414 = vmatpush.bf16.msra.mxu0 0
    %415 = vmatpush.bf16.msra.mxu0 0
    %416 = vmatpush.bf16.msra.mxu0 0
    %417 = vmatpush.bf16.msra.mxu0 0
    %418 = vmatpush.bf16.msra.mxu0 %v406
    %419 = vmatmul.bf16.gmra.mxu0 %v409
    %v420 = vpop.f32.mrf.mxu0
    %v421 = vadd.f32 0.0, %v420
    %v422 = vpop.f32.mrf.mxu0
    %v423 = vadd.f32 0.0, %v422
    %424 = vdwg.mxu0
    %425 = vrot.lane.b32.xlu0 %v145, 104
    %v426 = vpop.permute.xlu0 %425
    %427 = vrot.lane.b32.xlu0 %v145, 72
    %v428 = vpop.permute.xlu0 %427
    %v430 = vsel %vm148, %v426, 0
    %v433 = vsel %vm148, %v428, 0
    %435 = vmatpush.bf16.xpose.msra.mxu0 0
    %436 = vmatpush.bf16.xpose.msra.mxu0 0
    %437 = vmatpush.bf16.xpose.msra.mxu0 0
    %438 = vmatpush.bf16.xpose.msra.mxu0 0
    %439 = vmatpush.bf16.xpose.msra.mxu0 0
    %440 = vmatpush.bf16.xpose.msra.mxu0 0
    %441 = vmatpush.bf16.xpose.msra.mxu0 0
    %442 = vmatpush.bf16.xpose.msra.mxu0 %v433
    %443 = vmatmul.bf16.gmra.mxu0 %v430
    %v444 = vpop.f32.mrf.mxu0
    %v445 = vadd.f32 %v139, %v444
    %v446 = vpop.f32.mrf.mxu0
    %v447 = vadd.f32 %v140, %v446
    %448 = vdwg.mxu0
    %v449 = vsel %vm169, %v445, -inf
    %450 = vmax.xlane.f32.xlu0 %v449
    %v451 = vpop.xlane.xlu0 %450
    %v452 = vsel %vm169, %v447, -inf
    %453 = vmax.xlane.f32.xlu0 %v452
    %v454 = vpop.xlane.xlu0 %453
    %v455 = vsub.f32 %v445, %v451
    %v456 = vsub.f32 %v447, %v454
    %v457 = vmul.f32 %v455, 1.442695
    %v458 = vpow.pop %v457
    %v459 = vmul.f32 %v456, 1.442695
    %v460 = vpow.pop %v459
    %v461 = vsel %vm169, %v458, 0.0
    %462 = vadd.xlane.f32.xlu0 %v461
    %v463 = vpop.xlane.xlu0 %462
    %v464 = vsel %vm169, %v460, 0.0
    %465 = vadd.xlane.f32.xlu0 %v464
    %v466 = vpop.xlane.xlu0 %465
    %v467 = vrcp.pop %v463
    %v468 = vmul.f32 %v463, %v467
    %v469 = vsub.f32 1.0, %v468
    %v470 = vmul.f32 %v467, %v469
    %v471 = vadd.f32 %v467, %v470
    %vm472 = vweird.f32 %v463
    %vm473 = vweird.f32 %v467
    %vm474 = vmor %vm472, %vm473
    %v475 = vsel %vm474, %v467, %v471
    %v476 = vand.u32 2147483647, %v463
    %vm477 = vcmp.eq.f32.partialorder %v476, 8.507059e+37
    %v478 = vand.u32 %v463, 2147483648
    %v479 = vor.u32 1.1754944e-38, %v478
    %v480 = vsel %vm477, %v479, %v475
    %v481 = vmul.f32 %v458, %v480
    %v482 = vrcp.pop %v466
    %v483 = vmul.f32 %v466, %v482
    %v484 = vsub.f32 1.0, %v483
    %v485 = vmul.f32 %v482, %v484
    %v486 = vadd.f32 %v482, %v485
    %vm487 = vweird.f32 %v466
    %vm488 = vweird.f32 %v482
    %vm489 = vmor %vm487, %vm488
    %v490 = vsel %vm489, %v482, %v486
    %v491 = vand.u32 2147483647, %v466
    %vm492 = vcmp.eq.f32.partialorder %v491, 8.507059e+37
    %v493 = vand.u32 %v466, 2147483648
    %v494 = vor.u32 1.1754944e-38, %v493
    %v495 = vsel %vm492, %v494, %v490
    %v496 = vmul.f32 %v460, %v495
    %v497 = vpack.c.bf16 %v496, %v481
    %498 = vrot.lane.b32.xlu0 %v145, 40
    %v499 = vpop.permute.xlu0 %498
    %v502 = vsel %vm169, %v497, 0
    %504 = vmatpush.bf16.msra.mxu0 0
    %505 = vmatpush.bf16.msra.mxu0 0
    %506 = vmatpush.bf16.msra.mxu0 0
    %507 = vmatpush.bf16.msra.mxu0 0
    %508 = vmatpush.bf16.msra.mxu0 0
    %509 = vmatpush.bf16.msra.mxu0 0
    %510 = vmatpush.bf16.msra.mxu0 0
    %511 = vmatpush.bf16.msra.mxu0 %v499
    %512 = vmatmul.bf16.gmra.mxu0 %v502
    %v513 = vpop.f32.mrf.mxu0
    %v514 = vadd.f32 0.0, %v513
    %v515 = vpop.f32.mrf.mxu0
    %v516 = vadd.f32 0.0, %v515
    %517 = vdwg.mxu0
    %520 = vrot.lane.b32.xlu0 %v328, 8
    %v521 = vpop.permute.xlu0 %520
    %522 = vrot.lane.b32.xlu0 %v330, 8
    %v523 = vpop.permute.xlu0 %522
    %528 = vrot.lane.b32.xlu0 %v421, 16
    %v529 = vpop.permute.xlu0 %528
    %530 = vrot.lane.b32.xlu0 %v423, 16
    %v531 = vpop.permute.xlu0 %530
    %536 = vrot.lane.b32.xlu0 %v514, 24
    %v537 = vpop.permute.xlu0 %536
    %538 = vrot.lane.b32.xlu0 %v516, 24
    %v539 = vpop.permute.xlu0 %538
    %v542 = vsel %vm148, %v235, %v521
    %v543 = vsel %vm148, %v237, %v523
    %v544 = vsel %vm169, %v542, %v529
    %v545 = vsel %vm169, %v543, %v531
    %vm546 = vcmask 195584
    %v547 = vsel %vm546, %v544, %v537
    %v548 = vsel %vm546, %v545, %v539
    %v549 = vld [vmem:[#allocation2 + $0x20] sm:$0xf]
    %v550 = vld [vmem:[#allocation2 + $0x24] sm:$0xf]
    %v551 = vld [vmem:[#allocation2 + $0x28] sm:$0xf]
    %v552 = vld [vmem:[#allocation2 + $0x2c] sm:$0xf]
    %v553 = vpack.c.bf16 %v548, %v547
    %v554 = vperm.slane %v35, 0
    %v559 = vunpack.c.l.b16 %v549
    %v560 = vunpack.c.l.b16 %v550
    %v561 = vunpack.c.l.b16 %v551
    %v562 = vunpack.c.l.b16 %v552
    %v563 = vpack.c.b16 %v560, %v559
    %v564 = vpack.c.b16 %v562, %v561
    %vm567 = vcmask 261120
    %v569 = vsel %vm567, %v553, 0
    %571 = vmatpush.bf16.msra.mxu0 0
    %572 = vmatpush.bf16.msra.mxu0 0
    %573 = vmatpush.bf16.msra.mxu0 0
    %574 = vmatpush.bf16.msra.mxu0 0
    %575 = vmatpush.bf16.msra.mxu0 0
    %576 = vmatpush.bf16.msra.mxu0 0
    %577 = vmatpush.bf16.msra.mxu0 %v564
    %578 = vmatpush.bf16.msra.mxu0 %v563
    %579 = vmatmul.bf16.gmra.mxu0 %v569
    %v580 = vpop.f32.mrf.mxu0
    %v581 = vadd.f32 %v554, %v580
    %v582 = vpop.f32.mrf.mxu0
    %v583 = vadd.f32 %v554, %v582
    %584 = vdwg.mxu0
    %v585 = vadd.f32 %v32, %v581
    %v586 = vadd.f32 %v33, %v583
    %v587 = vsel %vm567, %v585, 0.0
    %588 = vadd.xlane.f32.xlu0 %v587
    %v589 = vpop.xlane.xlu0 %588
    %v590 = vsel %vm567, %v586, 0.0
    %591 = vadd.xlane.f32.xlu0 %v590
    %v592 = vpop.xlane.xlu0 %591
    %v593 = vrcp.pop 32.0
    %v594 = vmul.f32 32.0, %v593
    %v595 = vsub.f32 1.0, %v594
    %v596 = vmul.f32 %v593, %v595
    %v597 = vadd.f32 %v593, %v596
    %vm598 = vweird.f32 %v593
    %v599 = vsel %vm598, %v593, %v597
    %v600 = vmul.f32 %v589, %v599
    %v601 = vmul.f32 %v592, %v599
    %v602 = vsub.f32 %v585, %v600
    %v603 = vsub.f32 %v586, %v601
    %v604 = vmul.f32 %v602, %v602
    %v605 = vmul.f32 %v603, %v603
    %v606 = vsel %vm567, %v604, 0.0
    %607 = vadd.xlane.f32.xlu0 %v606
    %v608 = vpop.xlane.xlu0 %607
    %v609 = vsel %vm567, %v605, 0.0
    %610 = vadd.xlane.f32.xlu0 %v609
    %v611 = vpop.xlane.xlu0 %610
    %v612 = vmul.f32 %v608, %v599
    %v613 = vmul.f32 %v611, %v599
    %v614 = vadd.f32 %v612, 1e-05
    %v615 = vadd.f32 %v613, 1e-05
    %v616 = vrsqrt.pop %v614
    %v617 = vmul.f32 %v616, %v614
    %v618 = vmul.f32 %v617, %v616
    %v619 = vmul.f32 0.5, %v618
    %v620 = vsub.f32 1.5, %v619
    %v621 = vmul.f32 %v616, %v620
    %vm622 = vweird.f32 %v614
    %vm623 = vweird.f32 %v616
    %vm624 = vmor %vm622, %vm623
    %v625 = vsel %vm624, %v616, %v621
    %v626 = vrsqrt.pop %v615
    %v627 = vmul.f32 %v626, %v615
    %v628 = vmul.f32 %v627, %v626
    %v629 = vmul.f32 0.5, %v628
    %v630 = vsub.f32 1.5, %v629
    %v631 = vmul.f32 %v626, %v630
    %vm632 = vweird.f32 %v615
    %vm633 = vweird.f32 %v626
    %vm634 = vmor %vm632, %vm633
    %v635 = vsel %vm634, %v626, %v631
    %v636 = vmul.f32 %v602, %v625
    %v637 = vmul.f32 %v603, %v635
    %v638 = vperm.slane %v38, 0
    %v639 = vmul.f32 %v636, %v638
    %v640 = vmul.f32 %v637, %v638
    %v641 = vperm.slane %v39, 0
    %v642 = vadd.f32 %v639, %v641
    %v643 = vadd.f32 %v640, %v641
    %v644 = vld [vmem:[#allocation2 + $0x30] sm:$0xf]
    %v645 = vld [vmem:[#allocation2 + $0x34] sm:$0xf]
    %v646 = vld [vmem:[#allocation2 + $0x38] sm:$0xf]
    %v647 = vld [vmem:[#allocation2 + $0x3c] sm:$0xf]
    %v648 = vld [vmem:[#allocation2 + $0x40] sm:$0xf]
    %v649 = vld [vmem:[#allocation2 + $0x44] sm:$0xf]
    %v650 = vld [vmem:[#allocation2 + $0x48] sm:$0xf]
    %v651 = vld [vmem:[#allocation2 + $0x4c] sm:$0xf]
    %v652 = vld [vmem:[#allocation2 + $0x50] sm:$0xf]
    %v653 = vld [vmem:[#allocation2 + $0x54] sm:$0xf]
    %v654 = vld [vmem:[#allocation2 + $0x58] sm:$0xf]
    %v655 = vld [vmem:[#allocation2 + $0x5c] sm:$0xf]
    %v656 = vpack.c.bf16 %v643, %v642
    %v657 = vperm.slane %v36, 0
    %v662 = vunpack.c.l.b16 %v644
    %v663 = vunpack.c.l.b16 %v645
    %v664 = vunpack.c.l.b16 %v646
    %v665 = vunpack.c.l.b16 %v647
    %v666 = vpack.c.b16 %v663, %v662
    %v667 = vpack.c.b16 %v665, %v664
    %v671 = vsel %vm567, %v656, 0
    %673 = vmatpush.bf16.msra.mxu0 0
    %674 = vmatpush.bf16.msra.mxu0 0
    %675 = vmatpush.bf16.msra.mxu0 0
    %676 = vmatpush.bf16.msra.mxu0 0
    %677 = vmatpush.bf16.msra.mxu0 0
    %678 = vmatpush.bf16.msra.mxu0 0
    %679 = vmatpush.bf16.msra.mxu0 %v667
    %680 = vmatpush.bf16.msra.mxu0 %v666
    %681 = vmatmul.bf16.gmra.mxu0 %v671
    %v682 = vpop.f32.mrf.mxu0
    %v683 = vadd.f32 %v657, %v682
    %v684 = vpop.f32.mrf.mxu0
    %v685 = vadd.f32 %v657, %v684
    %686 = vdwg.mxu0
    %v687 = vmax.f32 %v683, 0.0
    %v688 = vmax.f32 %v685, 0.0
    %v689 = vpack.c.bf16 %v688, %v687
    %v690 = vperm.slane %v37, 0
    %v699 = vunpack.c.l.b16 %v648
    %v700 = vunpack.c.l.b16 %v649
    %v701 = vunpack.c.l.b16 %v650
    %v702 = vunpack.c.l.b16 %v651
    %v703 = vunpack.c.l.b16 %v652
    %v704 = vunpack.c.l.b16 %v653
    %v705 = vunpack.c.l.b16 %v654
    %v706 = vunpack.c.l.b16 %v655
    %v707 = vpack.c.b16 %v700, %v699
    %v708 = vpack.c.b16 %v702, %v701
    %v709 = vpack.c.b16 %v704, %v703
    %v710 = vpack.c.b16 %v706, %v705
    %v716 = vsel %vm76, %v689, 0
    %718 = vmatpush.bf16.msra.mxu0 0
    %719 = vmatpush.bf16.msra.mxu0 0
    %720 = vmatpush.bf16.msra.mxu0 0
    %721 = vmatpush.bf16.msra.mxu0 0
    %722 = vmatpush.bf16.msra.mxu0 %v710
    %723 = vmatpush.bf16.msra.mxu0 %v709
    %724 = vmatpush.bf16.msra.mxu0 %v708
    %725 = vmatpush.bf16.msra.mxu0 %v707
    %726 = vmatmul.bf16.gmra.mxu0 %v716
    %v727 = vpop.f32.mrf.mxu0
    %v728 = vadd.f32 %v690, %v727
    %v729 = vpop.f32.mrf.mxu0
    %v730 = vadd.f32 %v690, %v729
    %731 = vdwg.mxu0
    %v732 = vadd.f32 %v642, %v728
    %v733 = vadd.f32 %v643, %v730
    %v734 = vsel %vm567, %v732, 0.0
    %735 = vadd.xlane.f32.xlu0 %v734
    %v736 = vpop.xlane.xlu0 %735
    %v737 = vsel %vm567, %v733, 0.0
    %738 = vadd.xlane.f32.xlu0 %v737
    %v739 = vpop.xlane.xlu0 %738
    %v740 = vmul.f32 %v736, %v599
    %v741 = vmul.f32 %v739, %v599
    %v742 = vsub.f32 %v732, %v740
    %v743 = vsub.f32 %v733, %v741
    %v744 = vmul.f32 %v742, %v742
    %v745 = vmul.f32 %v743, %v743
    %v746 = vsel %vm567, %v744, 0.0
    %747 = vadd.xlane.f32.xlu0 %v746
    %v748 = vpop.xlane.xlu0 %747
    %v749 = vsel %vm567, %v745, 0.0
    %750 = vadd.xlane.f32.xlu0 %v749
    %v751 = vpop.xlane.xlu0 %750
    %v752 = vmul.f32 %v748, %v599
    %v753 = vmul.f32 %v751, %v599
    %v754 = vadd.f32 %v752, 1e-05
    %v755 = vadd.f32 %v753, 1e-05
    %v756 = vrsqrt.pop %v754
    %v757 = vmul.f32 %v756, %v754
    %v758 = vmul.f32 %v757, %v756
    %v759 = vmul.f32 0.5, %v758
    %v760 = vsub.f32 1.5, %v759
    %v761 = vmul.f32 %v756, %v760
    %vm762 = vweird.f32 %v754
    %vm763 = vweird.f32 %v756
    %vm764 = vmor %vm762, %vm763
    %v765 = vsel %vm764, %v756, %v761
    %v766 = vrsqrt.pop %v755
    %v767 = vmul.f32 %v766, %v755
    %v768 = vmul.f32 %v767, %v766
    %v769 = vmul.f32 0.5, %v768
    %v770 = vsub.f32 1.5, %v769
    %v771 = vmul.f32 %v766, %v770
    %vm772 = vweird.f32 %v755
    %vm773 = vweird.f32 %v766
    %vm774 = vmor %vm772, %vm773
    %v775 = vsel %vm774, %v766, %v771
    %v776 = vmul.f32 %v742, %v765
    %v777 = vmul.f32 %v743, %v775
    %v778 = vperm.slane %v40, 0
    %v779 = vmul.f32 %v776, %v778
    %v780 = vmul.f32 %v777, %v778
    %v781 = vperm.slane %v41, 0
    %v782 = vadd.f32 %v779, %v781
    %v783 = vadd.f32 %v780, %v781
    %784 = vst.msk [vmem:[#allocation5] sm:$0xff] %vm567, %v782
    %785 = vst.msk [vmem:[#allocation5 + $0x8] sm:$0xff] %vm567, %v783
    // Predicated region
    $region18: #{transformer_encoder_layer.1} parent=1 // pred_check
      _
    $region19: #{transformer_encoder_layer.1} parent=1 // pred_check_branch
      %787 = sbr.rel (0) target = $region21
    $region20: #{transformer_encoder_layer.1} parent=1 // pred_region
      %789 = vsyncadd [#allocation4], 0
      %s790 = sshll.u32 [#allocation5], 4
      %s791 = int_to_ptr.vmem [resolvable:$true] %s790
      %s792 = sshll.u32 %s3, 4
      %s793 = int_to_ptr.hbm [resolvable:$true] %s792
      %798 = dma.vmem_to_hbm [thread:$0]  %s791, 256, %s793, [#allocation4], 128, 128, 8
    $region21: #{transformer_encoder_layer.1} parent=1 // pred_fallthru
      _
    // Predicated region
    $region22: #{transformer_encoder_layer.1} parent=1 // pred_check
      _
    $region23: #{transformer_encoder_layer.1} parent=1 // pred_check_branch
      %800 = sbr.rel (0) target = $region25
    $region24: #{transformer_encoder_layer.1} parent=1 // pred_region
      %802 = dma.done [#allocation4], 256
    $region25: #{transformer_encoder_layer.1} parent=1 // pred_fallthru
      _
    %803 = vsyncpa [#allocation3], 1
    %804 = vsyncpa [#allocation4], 1

</llo_original>
